<compile_context>
chip_gen: v7x
topology: tpu7x:2x2x1
jax: 0.10.0
libtpu: 0.0.40
codegen_flags: <defaults>
</compile_context>

<pallas_src>
import functools

import jax
import jax.numpy as jnp
from jax.experimental import pallas as pl
from jax.experimental.pallas import tpu as pltpu

D_MODEL = 192
SEQ_LEN = 128
HEAD_SIZE = 32


def _head_kernel(x_ref, wqkv_ref, bias_ref, o_ref, *, mm_dtype, approx_recip):
    # x_ref:    (Bblk, T, C)   batch block
    # wqkv_ref: (C, 3H)        fused [Wq | Wk | Wv] projection weights
    # bias_ref: (T, T)         additive causal mask (0 on/below diag, -1e30 above)
    # o_ref:    (Bblk, T, H)
    bb, T, C = x_ref.shape
    H = o_ref.shape[-1]

    x = x_ref[...]                      # (bb, T, C) f32
    w = wqkv_ref[...]                   # (C, 3H)    f32

    # Fused projection: one MXU matmul with M = bb*T, N = 3H.
    x2 = x.reshape(bb * T, C).astype(mm_dtype)
    qkv = jnp.dot(x2, w.astype(mm_dtype),
                  preferred_element_type=jnp.float32)       # (bb*T, 3H) f32
    qkv = qkv.reshape(bb, T, 3 * H)

    # NOTE: scale is C**-0.5 (C = d_model), matching the reference module
    # (MinGPT uses d_model, not head_size, here).  Fold it into q (bb*T*H
    # elements) instead of the 4x-larger (bb,T,T) score tile.
    scale = jnp.float32(C ** -0.5)
    q = qkv[:, :, 0 * H:1 * H] * scale
    k = qkv[:, :, 1 * H:2 * H]
    v = qkv[:, :, 2 * H:3 * H]

    # Scores: contract the head dim of q and k directly (no k transpose).
    s = jax.lax.dot_general(
        q.astype(mm_dtype), k.astype(mm_dtype),
        dimension_numbers=(((2,), (2,)), ((0,), (0,))),
        preferred_element_type=jnp.float32)                  # (bb, T, T) f32
    s = s + bias_ref[...]                                    # additive causal mask

    # Numerically-stable softmax, all f32.  Normalize AFTER p @ v (smaller tile).
    m = jnp.max(s, axis=-1, keepdims=True)                   # (bb, T, 1)
    p = jnp.exp(s - m)                                       # unnormalized probs (EUP)
    denom = jnp.sum(p, axis=-1, keepdims=True)               # (bb, T, 1)

    # Dropout: identity in eval mode.
    # TODO(synk): pltpu.prng_seed/prng_random_bits dropout for training parity.

    out = jax.lax.dot_general(
        p.astype(mm_dtype), v.astype(mm_dtype),
        dimension_numbers=(((2,), (1,)), ((0,), (0,))),
        preferred_element_type=jnp.float32)                  # (bb, T, H) f32
    out = out * pl.reciprocal(denom, approx=approx_recip)
    o_ref[...] = out.astype(o_ref.dtype)


@functools.partial(jax.jit, static_argnames=("block_b", "use_bf16"))
def head_forward(x, wqkv, *, block_b=None, use_bf16=False):
    """x: (B, T, C) float32; wqkv: (C, 3H) float32 = [Wq|Wk|Wv]. Returns (B, T, H)."""
    B, T, C = x.shape
    H = wqkv.shape[1] // 3

    if block_b is None:
        # Batch elements per grid step.  Keep >= 2 grid steps when B >= 2 so a
        # parallel grid axis maps work onto both v7x TensorCores, while still
        # batching multiple elements per step for larger B (bigger MXU M,
        # amortized per-step overhead).
        block_b = max(1, B // 2)
        while B % block_b:
            block_b -= 1
    grid_b = B // block_b

    # Additive causal-mask bias, built once (constant index_map -> one DMA,
    # never re-fetched across grid steps).
    tril = jnp.tril(jnp.ones((T, T), dtype=bool))
    mask_bias = jnp.where(tril, 0.0, -1e30).astype(jnp.float32)

    kernel = functools.partial(
        _head_kernel,
        mm_dtype=jnp.bfloat16 if use_bf16 else jnp.float32,
        approx_recip=use_bf16,
    )

    return pl.pallas_call(
        kernel,
        out_shape=jax.ShapeDtypeStruct((B, T, H), x.dtype),
        grid_spec=pltpu.PrefetchScalarGridSpec(
            num_scalar_prefetch=0,
            grid=(grid_b,),
            in_specs=[
                pl.BlockSpec((block_b, T, C), lambda b: (b, 0, 0)),
                pl.BlockSpec((C, 3 * H), lambda b: (0, 0)),
                pl.BlockSpec((T, T), lambda b: (0, 0)),
            ],
            out_specs=pl.BlockSpec((block_b, T, H), lambda b: (b, 0, 0)),
        ),
        compiler_params=pltpu.CompilerParams(
            dimension_semantics=("parallel",),
        ),
    )(x, wqkv, mask_bias)


def _reference(x, wq, wk, wv):
    # Pure-JAX reference matching the PyTorch forward (eval mode).
    B, T, C = x.shape
    q = x @ wq
    k = x @ wk
    v = x @ wv
    wei = (q @ jnp.swapaxes(k, -2, -1)) * (C ** -0.5)
    mask = jnp.tril(jnp.ones((T, T), dtype=bool))
    wei = jnp.where(mask, wei, -jnp.inf)
    wei = jax.nn.softmax(wei, axis=-1)
    return wei @ v


if __name__ == "__main__":
    key = jax.random.PRNGKey(0)
    kx, kq, kk, kv = jax.random.split(key, 4)

    B, T, C, H = 2, SEQ_LEN, D_MODEL, HEAD_SIZE

    x = jax.random.normal(kx, (B, T, C), dtype=jnp.float32)
    # torch nn.Linear(d_model, head_size, bias=False) weight is (H, C); we store
    # the transposed (C, H) version so the kernel computes x @ W directly.
    bound = 1.0 / (C ** 0.5)
    wq = jax.random.uniform(kq, (C, H), jnp.float32, -bound, bound)
    wk = jax.random.uniform(kk, (C, H), jnp.float32, -bound, bound)
    wv = jax.random.uniform(kv, (C, H), jnp.float32, -bound, bound)
    wqkv = jnp.concatenate([wq, wk, wv], axis=1)          # (C, 3H)

    ref = _reference(x, wq, wk, wv)

    # Strict f32 path: exact parity with the PyTorch/JAX reference.
    out = jax.block_until_ready(head_forward(x, wqkv))
    assert out.shape == (B, T, H)
    assert jnp.allclose(out, ref, atol=1e-4, rtol=1e-4), "f32 path mismatch vs reference"

    # Fast path: bf16 MXU operands (v6e/v5e optimization), f32 softmax/accum.
    out_bf16 = jax.block_until_ready(head_forward(x, wqkv, use_bf16=True))
    assert jnp.allclose(out_bf16, ref, atol=5e-2, rtol=5e-2), "bf16 path mismatch vs reference"

    print("KERNEL_OK")
</pallas_src>

<mosaic_0001>
module attributes {stable_mosaic.version = 11 : i64} {
  func.func @_head_kernel(%arg0: i32, %arg1: memref<1x128x192xf32, #tpu.memory_space<vmem>>, %arg2: memref<192x96xf32, #tpu.memory_space<vmem>>, %arg3: memref<128x128xf32, #tpu.memory_space<vmem>>, %arg4: memref<1x128x32xf32, #tpu.memory_space<vmem>>) attributes {dimension_semantics = [#tpu.dimension_semantics<parallel>], iteration_bounds = array<i64: 2>, scalar_prefetch = 0 : i64, scratch_operands = 0 : i64, tpu.core_type = #tpu.core_type<tc>, window_params = [{transform_indices = @transform_0, window_bounds = array<i64: 1, 128, 192>}, {pipeline_mode = #tpu.pipeline_mode<synchronous>, transform_indices = @transform_1, window_bounds = array<i64: 192, 96>}, {pipeline_mode = #tpu.pipeline_mode<synchronous>, transform_indices = @transform_2, window_bounds = array<i64: 128, 128>}, {transform_indices = @transform_3, window_bounds = array<i64: 1, 128, 32>}]} {
    %c0 = arith.constant 0 : index
    %c0_0 = arith.constant 0 : index
    %c0_1 = arith.constant 0 : index
    %0 = vector.load %arg1[%c0, %c0_0, %c0_1] : memref<1x128x192xf32, #tpu.memory_space<vmem>>, vector<1x128x192xf32>
    %c0_2 = arith.constant 0 : index
    %c0_3 = arith.constant 0 : index
    %1 = vector.load %arg2[%c0_2, %c0_3] : memref<192x96xf32, #tpu.memory_space<vmem>>, vector<192x96xf32>
    %2 = vector.shape_cast %0 : vector<1x128x192xf32> to vector<128x192xf32>
    %cst = arith.constant dense<0.000000e+00> : vector<128x96xf32>
    %3 = tpu.matmul %2, %1, %cst {dimension_numbers = #tpu.dot_dimension_numbers<[1], [0], [0], [1], [0, 0, 1, 1], [], []>} : vector<128x192xf32>, vector<192x96xf32>, vector<128x96xf32> -> vector<128x96xf32>
    %4 = vector.shape_cast %3 : vector<128x96xf32> to vector<1x128x96xf32>
    %5 = vector.extract_strided_slice %4 {offsets = [0, 0, 0], sizes = [1, 128, 32], strides = [1, 1, 1]} : vector<1x128x96xf32> to vector<1x128x32xf32>
    %cst_4 = arith.constant 0.0721687824 : f32
    %6 = vector.broadcast %cst_4 : f32 to vector<1x128x32xf32>
    %7 = arith.mulf %5, %6 : vector<1x128x32xf32>
    %8 = vector.extract_strided_slice %4 {offsets = [0, 0, 32], sizes = [1, 128, 32], strides = [1, 1, 1]} : vector<1x128x96xf32> to vector<1x128x32xf32>
    %9 = vector.extract_strided_slice %4 {offsets = [0, 0, 64], sizes = [1, 128, 32], strides = [1, 1, 1]} : vector<1x128x96xf32> to vector<1x128x32xf32>
    %cst_5 = arith.constant dense<0.000000e+00> : vector<1x128x128xf32>
    %10 = tpu.matmul %7, %8, %cst_5 {dimension_numbers = #tpu.dot_dimension_numbers<[2], [2], [1], [1], [0, 0, 0, 1, 1, 1], [0], [0]>} : vector<1x128x32xf32>, vector<1x128x32xf32>, vector<1x128x128xf32> -> vector<1x128x128xf32>
    %c0_6 = arith.constant 0 : index
    %c0_7 = arith.constant 0 : index
    %11 = vector.load %arg3[%c0_6, %c0_7] : memref<128x128xf32, #tpu.memory_space<vmem>>, vector<128x128xf32>
    %12 = vector.shape_cast %11 : vector<128x128xf32> to vector<1x128x128xf32>
    %13 = arith.addf %10, %12 : vector<1x128x128xf32>
    %cst_8 = arith.constant dense<0xFF800000> : vector<1x128xf32>
    %14 = vector.multi_reduction <maximumf>, %13, %cst_8 [2] : vector<1x128x128xf32> to vector<1x128xf32>
    %15 = vector.shape_cast %14 : vector<1x128xf32> to vector<1x128x1xf32>
    %16 = vector.broadcast %15 : vector<1x128x1xf32> to vector<1x128x128xf32>
    %17 = arith.subf %13, %16 : vector<1x128x128xf32>
    %18 = math.exp %17 : vector<1x128x128xf32>
    %cst_9 = arith.constant dense<0.000000e+00> : vector<1x128xf32>
    %19 = vector.multi_reduction <add>, %18, %cst_9 [2] : vector<1x128x128xf32> to vector<1x128xf32>
    %20 = vector.shape_cast %19 : vector<1x128xf32> to vector<1x128x1xf32>
    %cst_10 = arith.constant dense<0.000000e+00> : vector<1x128x32xf32>
    %21 = tpu.matmul %18, %9, %cst_10 {dimension_numbers = #tpu.dot_dimension_numbers<[2], [1], [1], [2], [0, 0, 0, 1, 1, 2], [0], [0]>} : vector<1x128x128xf32>, vector<1x128x32xf32>, vector<1x128x32xf32> -> vector<1x128x32xf32>
    %22 = tpu.reciprocal %20 : vector<1x128x1xf32> -> vector<1x128x1xf32>
    %23 = vector.broadcast %22 : vector<1x128x1xf32> to vector<1x128x32xf32>
    %24 = arith.mulf %21, %23 : vector<1x128x32xf32>
    %c0_11 = arith.constant 0 : index
    %c0_12 = arith.constant 0 : index
    %c0_13 = arith.constant 0 : index
    %25 = vector.load %arg4[%c0_11, %c0_12, %c0_13] : memref<1x128x32xf32, #tpu.memory_space<vmem>>, vector<1x128x32xf32>
    tpu.vector_store %arg4[%c0_11, %c0_12, %c0_13], %24 {strides = array<i32>} : memref<1x128x32xf32, #tpu.memory_space<vmem>>, vector<1x128x32xf32>,
    return
  }
  func.func @transform_0(%arg0: i32) -> (i32, i32, i32) {
    %c0_i32 = arith.constant 0 : i32
    %c0_i32_0 = arith.constant 0 : i32
    %c0_i32_1 = arith.constant 0 : i32
    return %arg0, %c0_i32, %c0_i32_0 : i32, i32, i32
  }
  func.func @transform_1(%arg0: i32) -> (i32, i32) {
    %c0_i32 = arith.constant 0 : i32
    %c0_i32_0 = arith.constant 0 : i32
    %c0_i32_1 = arith.constant 0 : i32
    return %c0_i32, %c0_i32_0 : i32, i32
  }
  func.func @transform_2(%arg0: i32) -> (i32, i32) {
    %c0_i32 = arith.constant 0 : i32
    %c0_i32_0 = arith.constant 0 : i32
    %c0_i32_1 = arith.constant 0 : i32
    return %c0_i32, %c0_i32_0 : i32, i32
  }
  func.func @transform_3(%arg0: i32) -> (i32, i32, i32) {
    %c0_i32 = arith.constant 0 : i32
    %c0_i32_0 = arith.constant 0 : i32
    %c0_i32_1 = arith.constant 0 : i32
    return %arg0, %c0_i32, %c0_i32_0 : i32, i32, i32
  }
}

</mosaic_0001>

<llo_original>
// kernel: head_forward.1
$region0: #{head_forward.1}
  #allocation0 [shape = 'u32[]', space=smem, size = 0x4, offset = 0x4, fixed_abs, tag = 'smem constant byte address 0x4 - core index']
  #allocation1 [shape = 'u32[144,128]{1,0:T(1,128)}', space=vmem, size = 0x12000, scoped, tag = 'internal scratch']
  %s0 = inlined_call_operand.vmem [shape: f32[2,128,192], index: 0, kind: input, shape index: {}]
  %s1 = inlined_call_operand.vmem [shape: f32[192,96], index: 1, kind: input, shape index: {}]
  %s2 = inlined_call_operand.vmem [shape: f32[128,128], index: 2, kind: input, shape index: {}]
  %s3 = inlined_call_operand.vmem [shape: f32[2,128,32], index: 3, kind: output, shape index: {}]
  %s4 = sld [smem:[#allocation0]]
  $region45: #{head_forward.1} parent=0
    _
  %s6 = ssub.s32 1, %s4
  %s7 = scalar_select 0, %s6, %s4
  loop: start=0, step=1, limit=4
  $region2: #{head_forward.1} parent=0 // loop_pre_header
    _
  $region3: #{head_forward.1} parent=0 // loop_header
    %s9 = sphi 0, %s13
    %p10 = scmp.ge.s32.totalorder %s9, 4
    %s19 = sphi 0, %s21
    %s22 = sphi 0, %s19
    %s23 = sphi 0, %s22
    %s39 = sphi 0, %s23
    %s43 = sphi 0, %s43
    %s45 = sphi 0, %s43
    %s46 = sphi 0, %s45
    %s60 = sphi 0, %s46
    %s64 = sphi 0, %s64
    %s66 = sphi 0, %s64
    %s67 = sphi 0, %s66
    %s81 = sphi 0, %s67
    %s87 = sphi 0, %s89
    %s90 = sphi 0, %s87
    %s91 = sphi 0, %s90
    %s107 = sphi 0, %s91
  $region4: #{head_forward.1} parent=0 // loop_header_branch
    %12 = sbr.rel (%p10) target = $region8
  $region5: #{head_forward.1} parent=0 // loop_body
    %s14 = ssub.s32 %s9, 1
    %s15 = ssub.s32 %s9, 2
    %s16 = sadd.s32 %s9, 1
    %s17 = ssub.s32 %s9, %s16
    %p18 = scmp.eq.s32.totalorder %s17, 0
    %s20 = sadd.s32 %s19, 1
    %s21 = scalar_select %p18, %s19, %s20
    %p24 = pneg %p18
    %p25 = scmp.eq.s32.totalorder %s9, 1
    %p26 = por %p24, %p25
    %p27 = scmp.ne.s32.totalorder %s19, %s22
    %p28 = scmp.eq.s32.totalorder %s9, 0
    %p29 = por %p27, %p28
    %p30 = scmp.ne.s32.totalorder %s19, %s22
    %p31 = scmp.eq.s32.totalorder %s14, 1
    %p32 = por %p30, %p31
    %p33 = scmp.ne.s32.totalorder %s22, %s23
    %p34 = scmp.eq.s32.totalorder %s14, 0
    %p35 = por %p33, %p34
    %p36 = scmp.ne.s32.totalorder %s22, %s23
    %p37 = scmp.eq.s32.totalorder %s15, 1
    %p38 = por %p36, %p37
    %p40 = scmp.ne.s32.totalorder %s23, %s39
    %p41 = scmp.eq.s32.totalorder %s15, 0
    %p42 = por %p40, %p41
    %s44 = sadd.s32 %s43, 1
    %p47 = scmp.eq.s32.totalorder %s9, 1
    %p48 = scmp.ne.s32.totalorder %s43, %s45
    %p49 = scmp.eq.s32.totalorder %s9, 0
    %p50 = por %p48, %p49
    %p51 = scmp.ne.s32.totalorder %s43, %s45
    %p52 = scmp.eq.s32.totalorder %s14, 1
    %p53 = por %p51, %p52
    %p54 = scmp.ne.s32.totalorder %s45, %s46
    %p55 = scmp.eq.s32.totalorder %s14, 0
    %p56 = por %p54, %p55
    %p57 = scmp.ne.s32.totalorder %s45, %s46
    %p58 = scmp.eq.s32.totalorder %s15, 1
    %p59 = por %p57, %p58
    %p61 = scmp.ne.s32.totalorder %s46, %s60
    %p62 = scmp.eq.s32.totalorder %s15, 0
    %p63 = por %p61, %p62
    %s65 = sadd.s32 %s64, 1
    %p68 = scmp.eq.s32.totalorder %s9, 1
    %p69 = scmp.ne.s32.totalorder %s64, %s66
    %p70 = scmp.eq.s32.totalorder %s9, 0
    %p71 = por %p69, %p70
    %p72 = scmp.ne.s32.totalorder %s64, %s66
    %p73 = scmp.eq.s32.totalorder %s14, 1
    %p74 = por %p72, %p73
    %p75 = scmp.ne.s32.totalorder %s66, %s67
    %p76 = scmp.eq.s32.totalorder %s14, 0
    %p77 = por %p75, %p76
    %p78 = scmp.ne.s32.totalorder %s66, %s67
    %p79 = scmp.eq.s32.totalorder %s15, 1
    %p80 = por %p78, %p79
    %p82 = scmp.ne.s32.totalorder %s67, %s81
    %p83 = scmp.eq.s32.totalorder %s15, 0
    %p84 = por %p82, %p83
    %s85 = ssub.s32 %s9, %s16
    %p86 = scmp.eq.s32.totalorder %s85, 0
    %s88 = sadd.s32 %s87, 1
    %s89 = scalar_select %p86, %s87, %s88
    %p92 = pneg %p86
    %p93 = scmp.eq.s32.totalorder %s9, 1
    %p94 = por %p92, %p93
    %p95 = scmp.ne.s32.totalorder %s87, %s90
    %p96 = scmp.eq.s32.totalorder %s9, 0
    %p97 = por %p95, %p96
    %p98 = scmp.ne.s32.totalorder %s87, %s90
    %p99 = scmp.eq.s32.totalorder %s14, 1
    %p100 = por %p98, %p99
    %p101 = scmp.ne.s32.totalorder %s90, %s91
    %p102 = scmp.eq.s32.totalorder %s14, 0
    %p103 = por %p101, %p102
    %p104 = scmp.ne.s32.totalorder %s90, %s91
    %p105 = scmp.eq.s32.totalorder %s15, 1
    %p106 = por %p104, %p105
    %p108 = scmp.ne.s32.totalorder %s91, %s107
    %p109 = scmp.eq.s32.totalorder %s15, 0
    %p110 = por %p108, %p109
    %p111 = scmp.le.s32.totalorder 1, %s9
    %p112 = scmp.lt.s32.totalorder %s9, 3
    %p113 = pnand %p111, %p112
    %p114 = pneg %p113
    // Predicated region
    $region9: #{head_forward.1} parent=5 // pred_check
      _
    $region10: #{head_forward.1} parent=5 // pred_check_branch
      %116 = sbr.rel (%p113) target = $region12
    $region11: #{head_forward.1} parent=5 // pred_region
      %s117 = ssub.s32 %s9, 1
      // Predicated region
      $region13: #{head_forward.1} parent=11 // pred_check
        %p118 = pneg %p56
      $region14: #{head_forward.1} parent=11 // pred_check_branch
        %120 = sbr.rel (%p118) target = $region16
      $region15: #{head_forward.1} parent=11 // pred_region
        _
      $region16: #{head_forward.1} parent=11 // pred_fallthru
        _
      // Predicated region
      $region17: #{head_forward.1} parent=11 // pred_check
        %p121 = pneg %p77
      $region18: #{head_forward.1} parent=11 // pred_check_branch
        %123 = sbr.rel (%p121) target = $region20
      $region19: #{head_forward.1} parent=11 // pred_region
        _
      $region20: #{head_forward.1} parent=11 // pred_fallthru
        _
    $region12: #{head_forward.1} parent=5 // pred_fallthru
      _
    %p124 = scmp.lt.s32.totalorder %s9, 2
    // Predicated region
    $region21: #{head_forward.1} parent=5 // pred_check
      %p125 = pneg %p124
    $region22: #{head_forward.1} parent=5 // pred_check_branch
      %127 = sbr.rel (%p125) target = $region24
    $region23: #{head_forward.1} parent=5 // pred_region
      // Predicated region
      $region25: #{head_forward.1} parent=23 // pred_check
        %p128 = pneg %p29
      $region26: #{head_forward.1} parent=23 // pred_check_branch
        %130 = sbr.rel (%p128) target = $region28
      $region27: #{head_forward.1} parent=23 // pred_region
        %p131 = scmp.lt.s32.totalorder %s9, 1
        %s132 = scalar_select %p131, %s9, 1
        %s133 = smul.addr %s132, 32
        %s134 = smul.addr %s133, 8
        %s135 = scalar_lea.vmem %s0, %s134
      $region28: #{head_forward.1} parent=23 // pred_fallthru
        _
    $region24: #{head_forward.1} parent=5 // pred_fallthru
      _
    %p136 = scmp.le.s32.totalorder 1, %s9
    %p137 = scmp.lt.s32.totalorder %s9, 3
    %p138 = pnand %p136, %p137
    %p139 = pneg %p138
    // Predicated region
    $region29: #{head_forward.1} parent=5 // pred_check
      _
    $region30: #{head_forward.1} parent=5 // pred_check_branch
      %141 = sbr.rel (%p138) target = $region32
    $region31: #{head_forward.1} parent=5 // pred_region
      %s142 = ssub.s32 %s9, 1
      %p143 = scmp.lt.s32.totalorder %s14, 1
      %s144 = scalar_select %p143, %s14, 1
      %s145 = smul.addr %s144, 32
      %s146 = smul.addr %s145, 8
      %s147 = scalar_lea.vmem %s0, %s146
      %p148 = pneg %p35
      %p149 = pneg %p32
      %p150 = pneg %p56
      %p151 = pneg %p53
      %p152 = pneg %p77
      %p153 = pneg %p74
      %p154 = pneg %p103
      %p155 = pneg %p100
      %p156 = scmp.lt.s32.totalorder %s14, 1
      %s157 = scalar_select %p156, %s14, 1
      %s158 = smul.addr %s157, 16
      %s159 = smul.addr %s158, 8
      %s160 = scalar_lea.vmem %s3, %s159
      %p161 = scmp.lt.s32.totalorder %s14, 1
      %s162 = scalar_select %p161, %s14, 1
      %s163 = smul.addr %s162, 32
      %s164 = smul.addr %s163, 8
      %s165 = scalar_lea.vmem %s0, %s164
      %p166 = scmp.lt.s32.totalorder %s14, 1
      %s167 = scalar_select %p166, %s14, 1
      %s168 = smul.addr %s167, 16
      %s169 = smul.addr %s168, 8
      %s170 = scalar_lea.vmem %s3, %s169
      %v171 = vld [vmem:[%s165] sm:$0xff]
      %v172 = vld [vmem:[%s165 + $0x8] sm:$0xff]
      %v173 = vld [vmem:[%s165 + $0x10] sm:$0xff]
      %v174 = vld [vmem:[%s165 + $0x18] sm:$0xff]
      %v175 = vld [vmem:[%s165 + $0x20] sm:$0xff]
      %v176 = vld [vmem:[%s165 + $0x28] sm:$0xff]
      %v177 = vld [vmem:[%s165 + $0x30] sm:$0xff]
      %v178 = vld [vmem:[%s165 + $0x38] sm:$0xff]
      %v179 = vld [vmem:[%s165 + $0x40] sm:$0xff]
      %v180 = vld [vmem:[%s165 + $0x48] sm:$0xff]
      %v181 = vld [vmem:[%s165 + $0x50] sm:$0xff]
      %v182 = vld [vmem:[%s165 + $0x58] sm:$0xff]
      %v183 = vld [vmem:[%s165 + $0x60] sm:$0xff]
      %v184 = vld [vmem:[%s165 + $0x68] sm:$0xff]
      %v185 = vld [vmem:[%s165 + $0x70] sm:$0xff]
      %v186 = vld [vmem:[%s165 + $0x78] sm:$0xff]
      %v187 = vld [vmem:[%s165 + $0x80] sm:$0xff]
      %v188 = vld [vmem:[%s165 + $0x88] sm:$0xff]
      %v189 = vld [vmem:[%s165 + $0x90] sm:$0xff]
      %v190 = vld [vmem:[%s165 + $0x98] sm:$0xff]
      %v191 = vld [vmem:[%s165 + $0xa0] sm:$0xff]
      %v192 = vld [vmem:[%s165 + $0xa8] sm:$0xff]
      %v193 = vld [vmem:[%s165 + $0xb0] sm:$0xff]
      %v194 = vld [vmem:[%s165 + $0xb8] sm:$0xff]
      %v195 = vld [vmem:[%s165 + $0xc0] sm:$0xff]
      %v196 = vld [vmem:[%s165 + $0xc8] sm:$0xff]
      %v197 = vld [vmem:[%s165 + $0xd0] sm:$0xff]
      %v198 = vld [vmem:[%s165 + $0xd8] sm:$0xff]
      %v199 = vld [vmem:[%s165 + $0xe0] sm:$0xff]
      %v200 = vld [vmem:[%s165 + $0xe8] sm:$0xff]
      %v201 = vld [vmem:[%s165 + $0xf0] sm:$0xff]
      %v202 = vld [vmem:[%s165 + $0xf8] sm:$0xff]
      %v203 = vld [vmem:[%s1] sm:$0xff]
      %v204 = vld [vmem:[%s1 + $0x8] sm:$0xff]
      %v205 = vld [vmem:[%s1 + $0x10] sm:$0xff]
      %v206 = vld [vmem:[%s1 + $0x18] sm:$0xff]
      %v207 = vld [vmem:[%s1 + $0x20] sm:$0xff]
      %v208 = vld [vmem:[%s1 + $0x28] sm:$0xff]
      %v209 = vld [vmem:[%s1 + $0x30] sm:$0xff]
      %v210 = vld [vmem:[%s1 + $0x38] sm:$0xff]
      %v211 = vld [vmem:[%s1 + $0x40] sm:$0xff]
      %v212 = vld [vmem:[%s1 + $0x48] sm:$0xff]
      %v213 = vld [vmem:[%s1 + $0x50] sm:$0xff]
      %v214 = vld [vmem:[%s1 + $0x58] sm:$0xff]
      %v215 = vld [vmem:[%s1 + $0x60] sm:$0xff]
      %v216 = vld [vmem:[%s1 + $0x68] sm:$0xff]
      %v217 = vld [vmem:[%s1 + $0x70] sm:$0xff]
      %v218 = vld [vmem:[%s1 + $0x78] sm:$0xff]
      %v219 = vld [vmem:[%s1 + $0x80] sm:$0xff]
      %v220 = vld [vmem:[%s1 + $0x88] sm:$0xff]
      %v221 = vld [vmem:[%s1 + $0x90] sm:$0xff]
      %v222 = vld [vmem:[%s1 + $0x98] sm:$0xff]
      %v223 = vld [vmem:[%s1 + $0xa0] sm:$0xff]
      %v224 = vld [vmem:[%s1 + $0xa8] sm:$0xff]
      %v225 = vld [vmem:[%s1 + $0xb0] sm:$0xff]
      %v226 = vld [vmem:[%s1 + $0xb8] sm:$0xff]
      %vm227 = vcmask 523264
      %v229 = vsel %vm227, %v172, 0
      %v232 = vsel %vm227, %v174, 0
      %v235 = vsel %vm227, %v176, 0
      %v238 = vsel %vm227, %v178, 0
      %v241 = vsel %vm227, %v180, 0
      %v244 = vsel %vm227, %v182, 0
      %v247 = vsel %vm227, %v184, 0
      %v250 = vsel %vm227, %v186, 0
      %v253 = vsel %vm227, %v188, 0
      %v256 = vsel %vm227, %v190, 0
      %v259 = vsel %vm227, %v192, 0
      %v262 = vsel %vm227, %v194, 0
      %v265 = vsel %vm227, %v196, 0
      %v268 = vsel %vm227, %v198, 0
      %v271 = vsel %vm227, %v200, 0
      %v274 = vsel %vm227, %v202, 0
      %276 = vmatprep.subr.mxu0 0.0
      %277 = vmatpush1.msra.mxu0 %v203
      %278 = vmatprep.subr.mxu0 0.0
      %279 = vmatpush1.msra.mxu0 %v204
      %280 = vmatprep.subr.mxu0 0.0
      %281 = vmatpush1.msra.mxu0 %v205
      %282 = vmatprep.subr.mxu0 0.0
      %283 = vmatpush1.msra.mxu0 %v206
      %284 = vmatprep.subr.mxu0 0.0
      %285 = vmatpush1.msra.mxu0 %v207
      %286 = vmatprep.subr.mxu0 0.0
      %287 = vmatpush1.msra.mxu0 %v208
      %288 = vmatprep.subr.mxu0 0.0
      %289 = vmatpush1.msra.mxu0 %v209
      %290 = vmatprep.subr.mxu0 0.0
      %291 = vmatpush1.msra.mxu0 %v210
      %292 = vmatprep.subr.mxu0 0.0
      %293 = vmatpush1.msra.mxu0 %v211
      %294 = vmatprep.subr.mxu0 0.0
      %295 = vmatpush1.msra.mxu0 %v212
      %296 = vmatprep.subr.mxu0 0.0
      %297 = vmatpush1.msra.mxu0 %v213
      %298 = vmatprep.subr.mxu0 0.0
      %299 = vmatpush1.msra.mxu0 %v214
      %300 = vmatprep.subr.mxu0 0.0
      %301 = vmatpush1.msra.mxu0 %v215
      %302 = vmatprep.subr.mxu0 0.0
      %303 = vmatpush1.msra.mxu0 %v216
      %304 = vmatprep.subr.mxu0 0.0
      %305 = vmatpush1.msra.mxu0 %v217
      %306 = vmatprep.subr.mxu0 0.0
      %307 = vmatpush1.msra.mxu0 %v218
      %308 = vmatprep.subr.mxu0 0.0
      %309 = vmatpush1.msra.mxu0 %v219
      %310 = vmatprep.subr.mxu0 0.0
      %311 = vmatpush1.msra.mxu0 %v220
      %312 = vmatprep.subr.mxu0 0.0
      %313 = vmatpush1.msra.mxu0 %v221
      %314 = vmatprep.subr.mxu0 0.0
      %315 = vmatpush1.msra.mxu0 %v222
      %316 = vmatprep.subr.mxu0 0.0
      %317 = vmatpush1.msra.mxu0 %v223
      %318 = vmatprep.subr.mxu0 0.0
      %319 = vmatpush1.msra.mxu0 %v224
      %320 = vmatprep.subr.mxu0 0.0
      %321 = vmatpush1.msra.mxu0 %v225
      %322 = vmatprep.subr.mxu0 0.0
      %323 = vmatpush1.msra.mxu0 %v226
      %324 = vmatprep.subr.mxu0 0.0
      %325 = vmatpush1.msra.mxu0 0.0
      %326 = vmatprep.subr.mxu0 0.0
      %327 = vmatpush1.msra.mxu0 0.0
      %328 = vmatprep.subr.mxu0 0.0
      %329 = vmatpush1.msra.mxu0 0.0
      %330 = vmatprep.subr.mxu0 0.0
      %331 = vmatpush1.msra.mxu0 0.0
      %332 = vmatprep.subr.mxu0 0.0
      %333 = vmatpush1.msra.mxu0 0.0
      %334 = vmatprep.subr.mxu0 0.0
      %335 = vmatpush1.msra.mxu0 0.0
      %336 = vmatprep.subr.mxu0 0.0
      %337 = vmatpush1.msra.mxu0 0.0
      %338 = vmatprep.subr.mxu0 0.0
      %339 = vmatpush1.msra.mxu0 0.0
      %340 = vmatprep.mubr.f32.mxu0 %v229
      %341 = vmatmul.mubr.f32.gmra.mrb[0].mxu0 %v171
      %v342 = vpop.f32.mrb[0].mxu0
      %v343 = vadd.f32 0.0, %v342
      %v344 = vpop.f32.mrb[0].mxu0
      %345 = vmatprep.mubr.f32.mxu0 %v232
      %346 = vmatmul.mubr.f32.gmra.mrb[0].mxu0 %v173
      %v347 = vpop.f32.mrb[0].mxu0
      %v348 = vadd.f32 0.0, %v347
      %v349 = vpop.f32.mrb[0].mxu0
      %350 = vmatprep.mubr.f32.mxu0 %v235
      %351 = vmatmul.mubr.f32.gmra.mrb[0].mxu0 %v175
      %v352 = vpop.f32.mrb[0].mxu0
      %v353 = vadd.f32 0.0, %v352
      %v354 = vpop.f32.mrb[0].mxu0
      %355 = vmatprep.mubr.f32.mxu0 %v238
      %356 = vmatmul.mubr.f32.gmra.mrb[0].mxu0 %v177
      %v357 = vpop.f32.mrb[0].mxu0
      %v358 = vadd.f32 0.0, %v357
      %v359 = vpop.f32.mrb[0].mxu0
      %360 = vmatprep.mubr.f32.mxu0 %v241
      %361 = vmatmul.mubr.f32.gmra.mrb[0].mxu0 %v179
      %v362 = vpop.f32.mrb[0].mxu0
      %v363 = vadd.f32 0.0, %v362
      %v364 = vpop.f32.mrb[0].mxu0
      %365 = vmatprep.mubr.f32.mxu0 %v244
      %366 = vmatmul.mubr.f32.gmra.mrb[0].mxu0 %v181
      %v367 = vpop.f32.mrb[0].mxu0
      %v368 = vadd.f32 0.0, %v367
      %v369 = vpop.f32.mrb[0].mxu0
      %370 = vmatprep.mubr.f32.mxu0 %v247
      %371 = vmatmul.mubr.f32.gmra.mrb[0].mxu0 %v183
      %v372 = vpop.f32.mrb[0].mxu0
      %v373 = vadd.f32 0.0, %v372
      %v374 = vpop.f32.mrb[0].mxu0
      %375 = vmatprep.mubr.f32.mxu0 %v250
      %376 = vmatmul.mubr.f32.gmra.mrb[0].mxu0 %v185
      %v377 = vpop.f32.mrb[0].mxu0
      %v378 = vadd.f32 0.0, %v377
      %v379 = vpop.f32.mrb[0].mxu0
      %380 = vmatprep.mubr.f32.mxu0 %v253
      %381 = vmatmul.mubr.f32.gmra.mrb[0].mxu0 %v187
      %v382 = vpop.f32.mrb[0].mxu0
      %v383 = vadd.f32 0.0, %v382
      %v384 = vpop.f32.mrb[0].mxu0
      %385 = vmatprep.mubr.f32.mxu0 %v256
      %386 = vmatmul.mubr.f32.gmra.mrb[0].mxu0 %v189
      %v387 = vpop.f32.mrb[0].mxu0
      %v388 = vadd.f32 0.0, %v387
      %v389 = vpop.f32.mrb[0].mxu0
      %390 = vmatprep.mubr.f32.mxu0 %v259
      %391 = vmatmul.mubr.f32.gmra.mrb[0].mxu0 %v191
      %v392 = vpop.f32.mrb[0].mxu0
      %v393 = vadd.f32 0.0, %v392
      %v394 = vpop.f32.mrb[0].mxu0
      %395 = vmatprep.mubr.f32.mxu0 %v262
      %396 = vmatmul.mubr.f32.gmra.mrb[0].mxu0 %v193
      %v397 = vpop.f32.mrb[0].mxu0
      %v398 = vadd.f32 0.0, %v397
      %v399 = vpop.f32.mrb[0].mxu0
      %400 = vmatprep.mubr.f32.mxu0 %v265
      %401 = vmatmul.mubr.f32.gmra.mrb[0].mxu0 %v195
      %v402 = vpop.f32.mrb[0].mxu0
      %v403 = vadd.f32 0.0, %v402
      %v404 = vpop.f32.mrb[0].mxu0
      %405 = vmatprep.mubr.f32.mxu0 %v268
      %406 = vmatmul.mubr.f32.gmra.mrb[0].mxu0 %v197
      %v407 = vpop.f32.mrb[0].mxu0
      %v408 = vadd.f32 0.0, %v407
      %v409 = vpop.f32.mrb[0].mxu0
      %410 = vmatprep.mubr.f32.mxu0 %v271
      %411 = vmatmul.mubr.f32.gmra.mrb[0].mxu0 %v199
      %v412 = vpop.f32.mrb[0].mxu0
      %v413 = vadd.f32 0.0, %v412
      %v414 = vpop.f32.mrb[0].mxu0
      %415 = vmatprep.mubr.f32.mxu0 %v274
      %416 = vmatmul.mubr.f32.gmra.mrb[0].mxu0 %v201
      %v417 = vpop.f32.mrb[0].mxu0
      %v418 = vadd.f32 0.0, %v417
      %v419 = vpop.f32.mrb[0].mxu0
      %420 = vdwg.mxu0
      %v421 = vmul.f32 %v343, 0.07216878
      %v422 = vmul.f32 %v348, 0.07216878
      %v423 = vmul.f32 %v353, 0.07216878
      %v424 = vmul.f32 %v358, 0.07216878
      %v425 = vmul.f32 %v363, 0.07216878
      %v426 = vmul.f32 %v368, 0.07216878
      %v427 = vmul.f32 %v373, 0.07216878
      %v428 = vmul.f32 %v378, 0.07216878
      %v429 = vmul.f32 %v383, 0.07216878
      %v430 = vmul.f32 %v388, 0.07216878
      %v431 = vmul.f32 %v393, 0.07216878
      %v432 = vmul.f32 %v398, 0.07216878
      %v433 = vmul.f32 %v403, 0.07216878
      %v434 = vmul.f32 %v408, 0.07216878
      %v435 = vmul.f32 %v413, 0.07216878
      %v436 = vmul.f32 %v418, 0.07216878
      %v437 = vld [vmem:[%s2] sm:$0xff]
      %v438 = vld [vmem:[%s2 + $0x8] sm:$0xff]
      %v439 = vld [vmem:[%s2 + $0x10] sm:$0xff]
      %v440 = vld [vmem:[%s2 + $0x18] sm:$0xff]
      %v441 = vld [vmem:[%s2 + $0x20] sm:$0xff]
      %v442 = vld [vmem:[%s2 + $0x28] sm:$0xff]
      %v443 = vld [vmem:[%s2 + $0x30] sm:$0xff]
      %v444 = vld [vmem:[%s2 + $0x38] sm:$0xff]
      %v445 = vld [vmem:[%s2 + $0x40] sm:$0xff]
      %v446 = vld [vmem:[%s2 + $0x48] sm:$0xff]
      %v447 = vld [vmem:[%s2 + $0x50] sm:$0xff]
      %v448 = vld [vmem:[%s2 + $0x58] sm:$0xff]
      %v449 = vld [vmem:[%s2 + $0x60] sm:$0xff]
      %v450 = vld [vmem:[%s2 + $0x68] sm:$0xff]
      %v451 = vld [vmem:[%s2 + $0x70] sm:$0xff]
      %v452 = vld [vmem:[%s2 + $0x78] sm:$0xff]
      %469 = vrot.lane.b32.xlu0 %v343, 96
      %v470 = vpop.permute.xlu0 %469
      %471 = vrot.lane.b32.xlu0 %v348, 96
      %v472 = vpop.permute.xlu0 %471
      %473 = vrot.lane.b32.xlu0 %v353, 96
      %v474 = vpop.permute.xlu0 %473
      %475 = vrot.lane.b32.xlu0 %v358, 96
      %v476 = vpop.permute.xlu0 %475
      %477 = vrot.lane.b32.xlu0 %v363, 96
      %v478 = vpop.permute.xlu0 %477
      %479 = vrot.lane.b32.xlu0 %v368, 96
      %v480 = vpop.permute.xlu0 %479
      %481 = vrot.lane.b32.xlu0 %v373, 96
      %v482 = vpop.permute.xlu0 %481
      %483 = vrot.lane.b32.xlu0 %v378, 96
      %v484 = vpop.permute.xlu0 %483
      %485 = vrot.lane.b32.xlu0 %v383, 96
      %v486 = vpop.permute.xlu0 %485
      %487 = vrot.lane.b32.xlu0 %v388, 96
      %v488 = vpop.permute.xlu0 %487
      %489 = vrot.lane.b32.xlu0 %v393, 96
      %v490 = vpop.permute.xlu0 %489
      %491 = vrot.lane.b32.xlu0 %v398, 96
      %v492 = vpop.permute.xlu0 %491
      %493 = vrot.lane.b32.xlu0 %v403, 96
      %v494 = vpop.permute.xlu0 %493
      %495 = vrot.lane.b32.xlu0 %v408, 96
      %v496 = vpop.permute.xlu0 %495
      %497 = vrot.lane.b32.xlu0 %v413, 96
      %v498 = vpop.permute.xlu0 %497
      %499 = vrot.lane.b32.xlu0 %v418, 96
      %v500 = vpop.permute.xlu0 %499
      %vm501 = vcmask 261120
      %v503 = vsel %vm501, %v421, 0
      %v506 = vsel %vm501, %v422, 0
      %v509 = vsel %vm501, %v423, 0
      %v512 = vsel %vm501, %v424, 0
      %v515 = vsel %vm501, %v425, 0
      %v518 = vsel %vm501, %v426, 0
      %v521 = vsel %vm501, %v427, 0
      %v524 = vsel %vm501, %v428, 0
      %v527 = vsel %vm501, %v429, 0
      %v530 = vsel %vm501, %v430, 0
      %v533 = vsel %vm501, %v431, 0
      %v536 = vsel %vm501, %v432, 0
      %v539 = vsel %vm501, %v433, 0
      %v542 = vsel %vm501, %v434, 0
      %v545 = vsel %vm501, %v435, 0
      %v548 = vsel %vm501, %v436, 0
      %v550 = vsel %vm501, %v470, 0
      %v552 = vsel %vm501, %v472, 0
      %v554 = vsel %vm501, %v474, 0
      %v556 = vsel %vm501, %v476, 0
      %v558 = vsel %vm501, %v478, 0
      %v560 = vsel %vm501, %v480, 0
      %v562 = vsel %vm501, %v482, 0
      %v564 = vsel %vm501, %v484, 0
      %v566 = vsel %vm501, %v486, 0
      %v568 = vsel %vm501, %v488, 0
      %v570 = vsel %vm501, %v490, 0
      %v572 = vsel %vm501, %v492, 0
      %v574 = vsel %vm501, %v494, 0
      %v576 = vsel %vm501, %v496, 0
      %v578 = vsel %vm501, %v498, 0
      %v580 = vsel %vm501, %v500, 0
      %582 = vmatprep.subr.mxu0 0.0
      %583 = vmatpush1.xpose.msra.mxu0 %v550
      %584 = vmatprep.subr.mxu0 0.0
      %585 = vmatpush1.xpose.msra.mxu0 %v552
      %586 = vmatprep.subr.mxu0 0.0
      %587 = vmatpush1.xpose.msra.mxu0 %v554
      %588 = vmatprep.subr.mxu0 0.0
      %589 = vmatpush1.xpose.msra.mxu0 %v556
      %590 = vmatprep.subr.mxu0 0.0
      %591 = vmatpush1.xpose.msra.mxu0 %v558
      %592 = vmatprep.subr.mxu0 0.0
      %593 = vmatpush1.xpose.msra.mxu0 %v560
      %594 = vmatprep.subr.mxu0 0.0
      %595 = vmatpush1.xpose.msra.mxu0 %v562
      %596 = vmatprep.subr.mxu0 0.0
      %597 = vmatpush1.xpose.msra.mxu0 %v564
      %598 = vmatprep.subr.mxu0 0.0
      %599 = vmatpush1.xpose.msra.mxu0 %v566
      %600 = vmatprep.subr.mxu0 0.0
      %601 = vmatpush1.xpose.msra.mxu0 %v568
      %602 = vmatprep.subr.mxu0 0.0
      %603 = vmatpush1.xpose.msra.mxu0 %v570
      %604 = vmatprep.subr.mxu0 0.0
      %605 = vmatpush1.xpose.msra.mxu0 %v572
      %606 = vmatprep.subr.mxu0 0.0
      %607 = vmatpush1.xpose.msra.mxu0 %v574
      %608 = vmatprep.subr.mxu0 0.0
      %609 = vmatpush1.xpose.msra.mxu0 %v576
      %610 = vmatprep.subr.mxu0 0.0
      %611 = vmatpush1.xpose.msra.mxu0 %v578
      %612 = vmatprep.subr.mxu0 0.0
      %613 = vmatpush1.xpose.msra.mxu0 %v580
      %614 = vmatprep.subr.mxu0 0.0
      %615 = vmatpush1.xpose.msra.mxu0 0.0
      %616 = vmatprep.subr.mxu0 0.0
      %617 = vmatpush1.xpose.msra.mxu0 0.0
      %618 = vmatprep.subr.mxu0 0.0
      %619 = vmatpush1.xpose.msra.mxu0 0.0
      %620 = vmatprep.subr.mxu0 0.0
      %621 = vmatpush1.xpose.msra.mxu0 0.0
      %622 = vmatprep.subr.mxu0 0.0
      %623 = vmatpush1.xpose.msra.mxu0 0.0
      %624 = vmatprep.subr.mxu0 0.0
      %625 = vmatpush1.xpose.msra.mxu0 0.0
      %626 = vmatprep.subr.mxu0 0.0
      %627 = vmatpush1.xpose.msra.mxu0 0.0
      %628 = vmatprep.subr.mxu0 0.0
      %629 = vmatpush1.xpose.msra.mxu0 0.0
      %630 = vmatprep.subr.mxu0 0.0
      %631 = vmatpush1.xpose.msra.mxu0 0.0
      %632 = vmatprep.subr.mxu0 0.0
      %633 = vmatpush1.xpose.msra.mxu0 0.0
      %634 = vmatprep.subr.mxu0 0.0
      %635 = vmatpush1.xpose.msra.mxu0 0.0
      %636 = vmatprep.subr.mxu0 0.0
      %637 = vmatpush1.xpose.msra.mxu0 0.0
      %638 = vmatprep.subr.mxu0 0.0
      %639 = vmatpush1.xpose.msra.mxu0 0.0
      %640 = vmatprep.subr.mxu0 0.0
      %641 = vmatpush1.xpose.msra.mxu0 0.0
      %642 = vmatprep.subr.mxu0 0.0
      %643 = vmatpush1.xpose.msra.mxu0 0.0
      %644 = vmatprep.subr.mxu0 0.0
      %645 = vmatpush1.xpose.msra.mxu0 0.0
      %646 = vmatprep.mubr.f32.mxu0 0.0
      %647 = vmatmul.mubr.f32.gmra.mrb[0].mxu0 %v503
      %v648 = vpop.f32.mrb[0].mxu0
      %v649 = vadd.f32 %v437, %v648
      %v650 = vpop.f32.mrb[0].mxu0
      %651 = vmatprep.mubr.f32.mxu0 0.0
      %652 = vmatmul.mubr.f32.gmra.mrb[0].mxu0 %v506
      %v653 = vpop.f32.mrb[0].mxu0
      %v654 = vadd.f32 %v438, %v653
      %v655 = vpop.f32.mrb[0].mxu0
      %656 = vmatprep.mubr.f32.mxu0 0.0
      %657 = vmatmul.mubr.f32.gmra.mrb[0].mxu0 %v509
      %v658 = vpop.f32.mrb[0].mxu0
      %v659 = vadd.f32 %v439, %v658
      %v660 = vpop.f32.mrb[0].mxu0
      %661 = vmatprep.mubr.f32.mxu0 0.0
      %662 = vmatmul.mubr.f32.gmra.mrb[0].mxu0 %v512
      %v663 = vpop.f32.mrb[0].mxu0
      %v664 = vadd.f32 %v440, %v663
      %v665 = vpop.f32.mrb[0].mxu0
      %666 = vmatprep.mubr.f32.mxu0 0.0
      %667 = vmatmul.mubr.f32.gmra.mrb[0].mxu0 %v515
      %v668 = vpop.f32.mrb[0].mxu0
      %v669 = vadd.f32 %v441, %v668
      %v670 = vpop.f32.mrb[0].mxu0
      %671 = vmatprep.mubr.f32.mxu0 0.0
      %672 = vmatmul.mubr.f32.gmra.mrb[0].mxu0 %v518
      %v673 = vpop.f32.mrb[0].mxu0
      %v674 = vadd.f32 %v442, %v673
      %v675 = vpop.f32.mrb[0].mxu0
      %676 = vmatprep.mubr.f32.mxu0 0.0
      %677 = vmatmul.mubr.f32.gmra.mrb[0].mxu0 %v521
      %v678 = vpop.f32.mrb[0].mxu0
      %v679 = vadd.f32 %v443, %v678
      %v680 = vpop.f32.mrb[0].mxu0
      %681 = vmatprep.mubr.f32.mxu0 0.0
      %682 = vmatmul.mubr.f32.gmra.mrb[0].mxu0 %v524
      %v683 = vpop.f32.mrb[0].mxu0
      %v684 = vadd.f32 %v444, %v683
      %v685 = vpop.f32.mrb[0].mxu0
      %686 = vmatprep.mubr.f32.mxu0 0.0
      %687 = vmatmul.mubr.f32.gmra.mrb[0].mxu0 %v527
      %v688 = vpop.f32.mrb[0].mxu0
      %v689 = vadd.f32 %v445, %v688
      %v690 = vpop.f32.mrb[0].mxu0
      %691 = vmatprep.mubr.f32.mxu0 0.0
      %692 = vmatmul.mubr.f32.gmra.mrb[0].mxu0 %v530
      %v693 = vpop.f32.mrb[0].mxu0
      %v694 = vadd.f32 %v446, %v693
      %v695 = vpop.f32.mrb[0].mxu0
      %696 = vmatprep.mubr.f32.mxu0 0.0
      %697 = vmatmul.mubr.f32.gmra.mrb[0].mxu0 %v533
      %v698 = vpop.f32.mrb[0].mxu0
      %v699 = vadd.f32 %v447, %v698
      %v700 = vpop.f32.mrb[0].mxu0
      %701 = vmatprep.mubr.f32.mxu0 0.0
      %702 = vmatmul.mubr.f32.gmra.mrb[0].mxu0 %v536
      %v703 = vpop.f32.mrb[0].mxu0
      %v704 = vadd.f32 %v448, %v703
      %v705 = vpop.f32.mrb[0].mxu0
      %706 = vmatprep.mubr.f32.mxu0 0.0
      %707 = vmatmul.mubr.f32.gmra.mrb[0].mxu0 %v539
      %v708 = vpop.f32.mrb[0].mxu0
      %v709 = vadd.f32 %v449, %v708
      %v710 = vpop.f32.mrb[0].mxu0
      %711 = vmatprep.mubr.f32.mxu0 0.0
      %712 = vmatmul.mubr.f32.gmra.mrb[0].mxu0 %v542
      %v713 = vpop.f32.mrb[0].mxu0
      %v714 = vadd.f32 %v450, %v713
      %v715 = vpop.f32.mrb[0].mxu0
      %716 = vmatprep.mubr.f32.mxu0 0.0
      %717 = vmatmul.mubr.f32.gmra.mrb[0].mxu0 %v545
      %v718 = vpop.f32.mrb[0].mxu0
      %v719 = vadd.f32 %v451, %v718
      %v720 = vpop.f32.mrb[0].mxu0
      %721 = vmatprep.mubr.f32.mxu0 0.0
      %722 = vmatmul.mubr.f32.gmra.mrb[0].mxu0 %v548
      %v723 = vpop.f32.mrb[0].mxu0
      %v724 = vadd.f32 %v452, %v723
      %v725 = vpop.f32.mrb[0].mxu0
      %726 = vdwg.mxu0
      %727 = vmax.xlane.f32.xlu0 %v649
      %v728 = vpop.xlane.xlu0 %727
      %729 = vmax.xlane.f32.xlu0 %v654
      %v730 = vpop.xlane.xlu0 %729
      %731 = vmax.xlane.f32.xlu0 %v659
      %v732 = vpop.xlane.xlu0 %731
      %733 = vmax.xlane.f32.xlu0 %v664
      %v734 = vpop.xlane.xlu0 %733
      %735 = vmax.xlane.f32.xlu0 %v669
      %v736 = vpop.xlane.xlu0 %735
      %737 = vmax.xlane.f32.xlu0 %v674
      %v738 = vpop.xlane.xlu0 %737
      %739 = vmax.xlane.f32.xlu0 %v679
      %v740 = vpop.xlane.xlu0 %739
      %741 = vmax.xlane.f32.xlu0 %v684
      %v742 = vpop.xlane.xlu0 %741
      %743 = vmax.xlane.f32.xlu0 %v689
      %v744 = vpop.xlane.xlu0 %743
      %745 = vmax.xlane.f32.xlu0 %v694
      %v746 = vpop.xlane.xlu0 %745
      %747 = vmax.xlane.f32.xlu0 %v699
      %v748 = vpop.xlane.xlu0 %747
      %749 = vmax.xlane.f32.xlu0 %v704
      %v750 = vpop.xlane.xlu0 %749
      %751 = vmax.xlane.f32.xlu0 %v709
      %v752 = vpop.xlane.xlu0 %751
      %753 = vmax.xlane.f32.xlu0 %v714
      %v754 = vpop.xlane.xlu0 %753
      %755 = vmax.xlane.f32.xlu0 %v719
      %v756 = vpop.xlane.xlu0 %755
      %757 = vmax.xlane.f32.xlu0 %v724
      %v758 = vpop.xlane.xlu0 %757
      %v759 = vsub.f32 %v649, %v728
      %v760 = vsub.f32 %v654, %v730
      %v761 = vsub.f32 %v659, %v732
      %v762 = vsub.f32 %v664, %v734
      %v763 = vsub.f32 %v669, %v736
      %v764 = vsub.f32 %v674, %v738
      %v765 = vsub.f32 %v679, %v740
      %v766 = vsub.f32 %v684, %v742
      %v767 = vsub.f32 %v689, %v744
      %v768 = vsub.f32 %v694, %v746
      %v769 = vsub.f32 %v699, %v748
      %v770 = vsub.f32 %v704, %v750
      %v771 = vsub.f32 %v709, %v752
      %v772 = vsub.f32 %v714, %v754
      %v773 = vsub.f32 %v719, %v756
      %v774 = vsub.f32 %v724, %v758
      %v775 = vmul.f32 %v759, 1.442695
      %v776 = vpow.pop %v775
      %v777 = vmul.f32 %v760, 1.442695
      %v778 = vpow.pop %v777
      %v779 = vmul.f32 %v761, 1.442695
      %v780 = vpow.pop %v779
      %v781 = vmul.f32 %v762, 1.442695
      %v782 = vpow.pop %v781
      %v783 = vmul.f32 %v763, 1.442695
      %v784 = vpow.pop %v783
      %v785 = vmul.f32 %v764, 1.442695
      %v786 = vpow.pop %v785
      %v787 = vmul.f32 %v765, 1.442695
      %v788 = vpow.pop %v787
      %v789 = vmul.f32 %v766, 1.442695
      %v790 = vpow.pop %v789
      %v791 = vmul.f32 %v767, 1.442695
      %v792 = vpow.pop %v791
      %v793 = vmul.f32 %v768, 1.442695
      %v794 = vpow.pop %v793
      %v795 = vmul.f32 %v769, 1.442695
      %v796 = vpow.pop %v795
      %v797 = vmul.f32 %v770, 1.442695
      %v798 = vpow.pop %v797
      %v799 = vmul.f32 %v771, 1.442695
      %v800 = vpow.pop %v799
      %v801 = vmul.f32 %v772, 1.442695
      %v802 = vpow.pop %v801
      %v803 = vmul.f32 %v773, 1.442695
      %v804 = vpow.pop %v803
      %v805 = vmul.f32 %v774, 1.442695
      %v806 = vpow.pop %v805
      %807 = vadd.xlane.f32.xlu0 %v776
      %v808 = vpop.xlane.xlu0 %807
      %809 = vadd.xlane.f32.xlu0 %v778
      %v810 = vpop.xlane.xlu0 %809
      %811 = vadd.xlane.f32.xlu0 %v780
      %v812 = vpop.xlane.xlu0 %811
      %813 = vadd.xlane.f32.xlu0 %v782
      %v814 = vpop.xlane.xlu0 %813
      %815 = vadd.xlane.f32.xlu0 %v784
      %v816 = vpop.xlane.xlu0 %815
      %817 = vadd.xlane.f32.xlu0 %v786
      %v818 = vpop.xlane.xlu0 %817
      %819 = vadd.xlane.f32.xlu0 %v788
      %v820 = vpop.xlane.xlu0 %819
      %821 = vadd.xlane.f32.xlu0 %v790
      %v822 = vpop.xlane.xlu0 %821
      %823 = vadd.xlane.f32.xlu0 %v792
      %v824 = vpop.xlane.xlu0 %823
      %825 = vadd.xlane.f32.xlu0 %v794
      %v826 = vpop.xlane.xlu0 %825
      %827 = vadd.xlane.f32.xlu0 %v796
      %v828 = vpop.xlane.xlu0 %827
      %829 = vadd.xlane.f32.xlu0 %v798
      %v830 = vpop.xlane.xlu0 %829
      %831 = vadd.xlane.f32.xlu0 %v800
      %v832 = vpop.xlane.xlu0 %831
      %833 = vadd.xlane.f32.xlu0 %v802
      %v834 = vpop.xlane.xlu0 %833
      %835 = vadd.xlane.f32.xlu0 %v804
      %v836 = vpop.xlane.xlu0 %835
      %837 = vadd.xlane.f32.xlu0 %v806
      %v838 = vpop.xlane.xlu0 %837
      %839 = vrot.lane.b32.xlu0 %v343, 64
      %v840 = vpop.permute.xlu0 %839
      %841 = vrot.lane.b32.xlu0 %v348, 64
      %v842 = vpop.permute.xlu0 %841
      %843 = vrot.lane.b32.xlu0 %v353, 64
      %v844 = vpop.permute.xlu0 %843
      %845 = vrot.lane.b32.xlu0 %v358, 64
      %v846 = vpop.permute.xlu0 %845
      %847 = vrot.lane.b32.xlu0 %v363, 64
      %v848 = vpop.permute.xlu0 %847
      %849 = vrot.lane.b32.xlu0 %v368, 64
      %v850 = vpop.permute.xlu0 %849
      %851 = vrot.lane.b32.xlu0 %v373, 64
      %v852 = vpop.permute.xlu0 %851
      %853 = vrot.lane.b32.xlu0 %v378, 64
      %v854 = vpop.permute.xlu0 %853
      %855 = vrot.lane.b32.xlu0 %v383, 64
      %v856 = vpop.permute.xlu0 %855
      %857 = vrot.lane.b32.xlu0 %v388, 64
      %v858 = vpop.permute.xlu0 %857
      %859 = vrot.lane.b32.xlu0 %v393, 64
      %v860 = vpop.permute.xlu0 %859
      %861 = vrot.lane.b32.xlu0 %v398, 64
      %v862 = vpop.permute.xlu0 %861
      %863 = vrot.lane.b32.xlu0 %v403, 64
      %v864 = vpop.permute.xlu0 %863
      %865 = vrot.lane.b32.xlu0 %v408, 64
      %v866 = vpop.permute.xlu0 %865
      %867 = vrot.lane.b32.xlu0 %v413, 64
      %v868 = vpop.permute.xlu0 %867
      %869 = vrot.lane.b32.xlu0 %v418, 64
      %v870 = vpop.permute.xlu0 %869
      %887 = vmatprep.subr.mxu0 0.0
      %888 = vmatpush1.msra.mxu0 %v840
      %889 = vmatprep.subr.mxu0 0.0
      %890 = vmatpush1.msra.mxu0 %v842
      %891 = vmatprep.subr.mxu0 0.0
      %892 = vmatpush1.msra.mxu0 %v844
      %893 = vmatprep.subr.mxu0 0.0
      %894 = vmatpush1.msra.mxu0 %v846
      %895 = vmatprep.subr.mxu0 0.0
      %896 = vmatpush1.msra.mxu0 %v848
      %897 = vmatprep.subr.mxu0 0.0
      %898 = vmatpush1.msra.mxu0 %v850
      %899 = vmatprep.subr.mxu0 0.0
      %900 = vmatpush1.msra.mxu0 %v852
      %901 = vmatprep.subr.mxu0 0.0
      %902 = vmatpush1.msra.mxu0 %v854
      %903 = vmatprep.subr.mxu0 0.0
      %904 = vmatpush1.msra.mxu0 %v856
      %905 = vmatprep.subr.mxu0 0.0
      %906 = vmatpush1.msra.mxu0 %v858
      %907 = vmatprep.subr.mxu0 0.0
      %908 = vmatpush1.msra.mxu0 %v860
      %909 = vmatprep.subr.mxu0 0.0
      %910 = vmatpush1.msra.mxu0 %v862
      %911 = vmatprep.subr.mxu0 0.0
      %912 = vmatpush1.msra.mxu0 %v864
      %913 = vmatprep.subr.mxu0 0.0
      %914 = vmatpush1.msra.mxu0 %v866
      %915 = vmatprep.subr.mxu0 0.0
      %916 = vmatpush1.msra.mxu0 %v868
      %917 = vmatprep.subr.mxu0 0.0
      %918 = vmatpush1.msra.mxu0 %v870
      %919 = vmatprep.subr.mxu0 0.0
      %920 = vmatpush1.msra.mxu0 0.0
      %921 = vmatprep.subr.mxu0 0.0
      %922 = vmatpush1.msra.mxu0 0.0
      %923 = vmatprep.subr.mxu0 0.0
      %924 = vmatpush1.msra.mxu0 0.0
      %925 = vmatprep.subr.mxu0 0.0
      %926 = vmatpush1.msra.mxu0 0.0
      %927 = vmatprep.subr.mxu0 0.0
      %928 = vmatpush1.msra.mxu0 0.0
      %929 = vmatprep.subr.mxu0 0.0
      %930 = vmatpush1.msra.mxu0 0.0
      %931 = vmatprep.subr.mxu0 0.0
      %932 = vmatpush1.msra.mxu0 0.0
      %933 = vmatprep.subr.mxu0 0.0
      %934 = vmatpush1.msra.mxu0 0.0
      %935 = vmatprep.subr.mxu0 0.0
      %936 = vmatpush1.msra.mxu0 0.0
      %937 = vmatprep.subr.mxu0 0.0
      %938 = vmatpush1.msra.mxu0 0.0
      %939 = vmatprep.subr.mxu0 0.0
      %940 = vmatpush1.msra.mxu0 0.0
      %941 = vmatprep.subr.mxu0 0.0
      %942 = vmatpush1.msra.mxu0 0.0
      %943 = vmatprep.subr.mxu0 0.0
      %944 = vmatpush1.msra.mxu0 0.0
      %945 = vmatprep.subr.mxu0 0.0
      %946 = vmatpush1.msra.mxu0 0.0
      %947 = vmatprep.subr.mxu0 0.0
      %948 = vmatpush1.msra.mxu0 0.0
      %949 = vmatprep.subr.mxu0 0.0
      %950 = vmatpush1.msra.mxu0 0.0
      %951 = vmatprep.mubr.f32.mxu0 0.0
      %952 = vmatmul.mubr.f32.gmra.mrb[0].mxu0 %v776
      %v953 = vpop.f32.mrb[0].mxu0
      %v954 = vadd.f32 0.0, %v953
      %v955 = vpop.f32.mrb[0].mxu0
      %956 = vmatprep.mubr.f32.mxu0 0.0
      %957 = vmatmul.mubr.f32.gmra.mrb[0].mxu0 %v778
      %v958 = vpop.f32.mrb[0].mxu0
      %v959 = vadd.f32 0.0, %v958
      %v960 = vpop.f32.mrb[0].mxu0
      %961 = vmatprep.mubr.f32.mxu0 0.0
      %962 = vmatmul.mubr.f32.gmra.mrb[0].mxu0 %v780
      %v963 = vpop.f32.mrb[0].mxu0
      %v964 = vadd.f32 0.0, %v963
      %v965 = vpop.f32.mrb[0].mxu0
      %966 = vmatprep.mubr.f32.mxu0 0.0
      %967 = vmatmul.mubr.f32.gmra.mrb[0].mxu0 %v782
      %v968 = vpop.f32.mrb[0].mxu0
      %v969 = vadd.f32 0.0, %v968
      %v970 = vpop.f32.mrb[0].mxu0
      %971 = vmatprep.mubr.f32.mxu0 0.0
      %972 = vmatmul.mubr.f32.gmra.mrb[0].mxu0 %v784
      %v973 = vpop.f32.mrb[0].mxu0
      %v974 = vadd.f32 0.0, %v973
      %v975 = vpop.f32.mrb[0].mxu0
      %976 = vmatprep.mubr.f32.mxu0 0.0
      %977 = vmatmul.mubr.f32.gmra.mrb[0].mxu0 %v786
      %v978 = vpop.f32.mrb[0].mxu0
      %v979 = vadd.f32 0.0, %v978
      %v980 = vpop.f32.mrb[0].mxu0
      %981 = vmatprep.mubr.f32.mxu0 0.0
      %982 = vmatmul.mubr.f32.gmra.mrb[0].mxu0 %v788
      %v983 = vpop.f32.mrb[0].mxu0
      %v984 = vadd.f32 0.0, %v983
      %v985 = vpop.f32.mrb[0].mxu0
      %986 = vmatprep.mubr.f32.mxu0 0.0
      %987 = vmatmul.mubr.f32.gmra.mrb[0].mxu0 %v790
      %v988 = vpop.f32.mrb[0].mxu0
      %v989 = vadd.f32 0.0, %v988
      %v990 = vpop.f32.mrb[0].mxu0
      %991 = vmatprep.mubr.f32.mxu0 0.0
      %992 = vmatmul.mubr.f32.gmra.mrb[0].mxu0 %v792
      %v993 = vpop.f32.mrb[0].mxu0
      %v994 = vadd.f32 0.0, %v993
      %v995 = vpop.f32.mrb[0].mxu0
      %996 = vmatprep.mubr.f32.mxu0 0.0
      %997 = vmatmul.mubr.f32.gmra.mrb[0].mxu0 %v794
      %v998 = vpop.f32.mrb[0].mxu0
      %v999 = vadd.f32 0.0, %v998
      %v1000 = vpop.f32.mrb[0].mxu0
      %1001 = vmatprep.mubr.f32.mxu0 0.0
      %1002 = vmatmul.mubr.f32.gmra.mrb[0].mxu0 %v796
      %v1003 = vpop.f32.mrb[0].mxu0
      %v1004 = vadd.f32 0.0, %v1003
      %v1005 = vpop.f32.mrb[0].mxu0
      %1006 = vmatprep.mubr.f32.mxu0 0.0
      %1007 = vmatmul.mubr.f32.gmra.mrb[0].mxu0 %v798
      %v1008 = vpop.f32.mrb[0].mxu0
      %v1009 = vadd.f32 0.0, %v1008
      %v1010 = vpop.f32.mrb[0].mxu0
      %1011 = vmatprep.mubr.f32.mxu0 0.0
      %1012 = vmatmul.mubr.f32.gmra.mrb[0].mxu0 %v800
      %v1013 = vpop.f32.mrb[0].mxu0
      %v1014 = vadd.f32 0.0, %v1013
      %v1015 = vpop.f32.mrb[0].mxu0
      %1016 = vmatprep.mubr.f32.mxu0 0.0
      %1017 = vmatmul.mubr.f32.gmra.mrb[0].mxu0 %v802
      %v1018 = vpop.f32.mrb[0].mxu0
      %v1019 = vadd.f32 0.0, %v1018
      %v1020 = vpop.f32.mrb[0].mxu0
      %1021 = vmatprep.mubr.f32.mxu0 0.0
      %1022 = vmatmul.mubr.f32.gmra.mrb[0].mxu0 %v804
      %v1023 = vpop.f32.mrb[0].mxu0
      %v1024 = vadd.f32 0.0, %v1023
      %v1025 = vpop.f32.mrb[0].mxu0
      %1026 = vmatprep.mubr.f32.mxu0 0.0
      %1027 = vmatmul.mubr.f32.gmra.mrb[0].mxu0 %v806
      %v1028 = vpop.f32.mrb[0].mxu0
      %v1029 = vadd.f32 0.0, %v1028
      %v1030 = vpop.f32.mrb[0].mxu0
      %1031 = vdwg.mxu0
      %v1032 = vrcp.pop %v808
      %v1033 = vrcp.pop %v810
      %v1034 = vrcp.pop %v812
      %v1035 = vrcp.pop %v814
      %v1036 = vrcp.pop %v816
      %v1037 = vrcp.pop %v818
      %v1038 = vrcp.pop %v820
      %v1039 = vrcp.pop %v822
      %v1040 = vrcp.pop %v824
      %v1041 = vrcp.pop %v826
      %v1042 = vrcp.pop %v828
      %v1043 = vrcp.pop %v830
      %v1044 = vrcp.pop %v832
      %v1045 = vrcp.pop %v834
      %v1046 = vrcp.pop %v836
      %v1047 = vrcp.pop %v838
      %v1048 = vmul.f32 %v954, %v1032
      %v1049 = vmul.f32 %v959, %v1033
      %v1050 = vmul.f32 %v964, %v1034
      %v1051 = vmul.f32 %v969, %v1035
      %v1052 = vmul.f32 %v974, %v1036
      %v1053 = vmul.f32 %v979, %v1037
      %v1054 = vmul.f32 %v984, %v1038
      %v1055 = vmul.f32 %v989, %v1039
      %v1056 = vmul.f32 %v994, %v1040
      %v1057 = vmul.f32 %v999, %v1041
      %v1058 = vmul.f32 %v1004, %v1042
      %v1059 = vmul.f32 %v1009, %v1043
      %v1060 = vmul.f32 %v1014, %v1044
      %v1061 = vmul.f32 %v1019, %v1045
      %v1062 = vmul.f32 %v1024, %v1046
      %v1063 = vmul.f32 %v1029, %v1047
      %1064 = vst.msk [vmem:[%s170] sm:$0xff] %vm501, %v1048
      %1065 = vst.msk [vmem:[%s170 + $0x8] sm:$0xff] %vm501, %v1049
      %1066 = vst.msk [vmem:[%s170 + $0x10] sm:$0xff] %vm501, %v1050
      %1067 = vst.msk [vmem:[%s170 + $0x18] sm:$0xff] %vm501, %v1051
      %1068 = vst.msk [vmem:[%s170 + $0x20] sm:$0xff] %vm501, %v1052
      %1069 = vst.msk [vmem:[%s170 + $0x28] sm:$0xff] %vm501, %v1053
      %1070 = vst.msk [vmem:[%s170 + $0x30] sm:$0xff] %vm501, %v1054
      %1071 = vst.msk [vmem:[%s170 + $0x38] sm:$0xff] %vm501, %v1055
      %1072 = vst.msk [vmem:[%s170 + $0x40] sm:$0xff] %vm501, %v1056
      %1073 = vst.msk [vmem:[%s170 + $0x48] sm:$0xff] %vm501, %v1057
      %1074 = vst.msk [vmem:[%s170 + $0x50] sm:$0xff] %vm501, %v1058
      %1075 = vst.msk [vmem:[%s170 + $0x58] sm:$0xff] %vm501, %v1059
      %1076 = vst.msk [vmem:[%s170 + $0x60] sm:$0xff] %vm501, %v1060
      %1077 = vst.msk [vmem:[%s170 + $0x68] sm:$0xff] %vm501, %v1061
      %1078 = vst.msk [vmem:[%s170 + $0x70] sm:$0xff] %vm501, %v1062
      %1079 = vst.msk [vmem:[%s170 + $0x78] sm:$0xff] %vm501, %v1063
      %p1080 = scmp.lt.s32.totalorder %s14, 1
      %s1081 = scalar_select %p1080, %s14, 1
      %s1082 = smul.addr %s1081, 16
      %s1083 = smul.addr %s1082, 8
      %s1084 = scalar_lea.vmem %s3, %s1083
      // Predicated region
      $region33: #{head_forward.1} parent=31 // pred_check
        %p1085 = pneg %p100
      $region34: #{head_forward.1} parent=31 // pred_check_branch
        %1087 = sbr.rel (%p1085) target = $region36
      $region35: #{head_forward.1} parent=31 // pred_region
        _
      $region36: #{head_forward.1} parent=31 // pred_fallthru
        _
    $region32: #{head_forward.1} parent=5 // pred_fallthru
      _
    %p1088 = scmp.le.s32.totalorder 2, %s9
    // Predicated region
    $region37: #{head_forward.1} parent=5 // pred_check
      %p1089 = pneg %p1088
    $region38: #{head_forward.1} parent=5 // pred_check_branch
      %1091 = sbr.rel (%p1089) target = $region40
    $region39: #{head_forward.1} parent=5 // pred_region
      %s1092 = ssub.s32 %s9, 2
      // Predicated region
      $region41: #{head_forward.1} parent=39 // pred_check
        %p1093 = pneg %p106
      $region42: #{head_forward.1} parent=39 // pred_check_branch
        %1095 = sbr.rel (%p1093) target = $region44
      $region43: #{head_forward.1} parent=39 // pred_region
        %p1096 = scmp.lt.s32.totalorder %s15, 1
        %s1097 = scalar_select %p1096, %s15, 1
        %s1098 = smul.addr %s1097, 16
        %s1099 = smul.addr %s1098, 8
        %s1100 = scalar_lea.vmem %s3, %s1099
      $region44: #{head_forward.1} parent=39 // pred_fallthru
        _
    $region40: #{head_forward.1} parent=5 // pred_fallthru
      _
  $region6: #{head_forward.1} parent=0 // loop_footer
    %s13 = sadd.s32 1, %s9
  $region7: #{head_forward.1} parent=0 // loop_footer_branch
    %8 = sbr.rel target = $region3
  $region8: #{head_forward.1} parent=0 // loop_exit
    _

</llo_original>
